<compile_context>
chip_gen: v5e
topology: v5e:2x2
jax: 0.10.0
libtpu: 0.0.40
codegen_flags: <defaults>
</compile_context>

<pallas_src>
import math
import functools

import jax
import jax.numpy as jnp
from jax import lax
from jax.experimental import pallas as pl
from jax.experimental.pallas import tpu as pltpu

# bf16 operands on the MXU (native on v5e/v6e/v7x); accumulation stays f32.
MATMUL_DTYPE = jnp.bfloat16
ACT_DTYPE = jnp.bfloat16          # intermediate activations (q/k/v, attn out)

# GEMM tiles sized for the 2x256x256 MXU on v6e/v7x; on v5e 128-wide M/N is
# equivalent. Attention tiles: tq=256 fills the MXU rows, tkv=512 amortizes
# per-grid-step overhead while keeping the (tq, tkv) scores block small.
TM_TARGET, TN_TARGET, TK_TARGET = 256, 256, 512
TQ_TARGET, TKV_TARGET = 256, 512


def _tile(dim, target, align):
    """Full dim if it fits, else the largest `align`-multiple divisor <= target.

    Guarantees the returned tile either equals the full dimension or is a
    multiple of `align`, so BlockSpecs never violate the (8, 128) rule.
    """
    if dim <= target:
        return dim
    t = (target // align) * align
    while t > 0:
        if dim % t == 0:
            return t
        t -= align
    # No aligned divisor: fall back to the full dimension (always correct).
    # TODO(synk): pad + mask edges instead for pathological (e.g. prime) dims.
    return dim


# ----------------------------------------------------------------------------
# Kernels
# ----------------------------------------------------------------------------
def linear_kernel(x_ref, w_ref, b_ref, o_ref, acc_ref):
    """One (tm, tn) tile of y[p] = x @ w[p] + b[p] for a stacked weight w.

    x_ref: (tm, tk); w_ref: (1, tk, tn) pre-transposed (in, out) bf16 weight;
    b_ref: (1, 1, tn) f32 bias; o_ref: (1, tm, tn); acc_ref: (tm, tn) f32.
    Grid = (P, M/tm, N/tn, K/tk) with the K axis last ("arbitrary").
    """
    @pl.when(pl.program_id(3) == 0)
    def _():
        acc_ref[...] = jnp.zeros_like(acc_ref)

    acc_ref[...] += jnp.dot(
        x_ref[...].astype(MATMUL_DTYPE),
        w_ref[0],
        preferred_element_type=jnp.float32,
    )

    @pl.when(pl.program_id(3) == pl.num_programs(3) - 1)
    def _():
        o_ref[0] = (acc_ref[...] + b_ref[0]).astype(o_ref.dtype)


def attention_kernel(q_ref, k_ref, v_ref, o_ref, m_ref, l_ref, acc_ref,
                     *, num_heads, d_k):
    """Flash-style scaled-dot-product attention for one (b, q-tile) block.

    q_ref: (1, 1, tq, D); k_ref / v_ref: (1, 1, tkv, D); o_ref: (1, tq, D).
    m_ref / l_ref: (num_heads, tq, 1) f32; acc_ref: (tq, D) f32.
    Grid = (B, S/tq, S/tkv) with the KV axis last ("arbitrary").
    The 1/sqrt(d_k) scale is already folded into W_q at init time.
    """
    kvi = pl.program_id(2)

    @pl.when(kvi == 0)
    def _():
        m_ref[...] = jnp.full(m_ref.shape, -jnp.inf, m_ref.dtype)
        l_ref[...] = jnp.zeros_like(l_ref)
        acc_ref[...] = jnp.zeros_like(acc_ref)

    for h in range(num_heads):                       # static unroll over heads
        lo = h * d_k
        qh = q_ref[0, 0, :, lo:lo + d_k]             # (tq,  d_k) bf16
        kh = k_ref[0, 0, :, lo:lo + d_k]             # (tkv, d_k) bf16
        vh = v_ref[0, 0, :, lo:lo + d_k]             # (tkv, d_k) bf16

        # scores = qh @ kh.T, transpose folded into the contraction.
        s = lax.dot_general(
            qh, kh,
            dimension_numbers=(((1,), (1,)), ((), ())),
            preferred_element_type=jnp.float32,
        )                                            # (tq, tkv) f32

        m_prev = m_ref[h]                            # (tq, 1)
        m_new = jnp.maximum(m_prev, jnp.max(s, axis=-1, keepdims=True))
        alpha = jnp.exp(m_prev - m_new)
        p = jnp.exp(s - m_new)                       # (tq, tkv)
        l_ref[h] = alpha * l_ref[h] + jnp.sum(p, axis=-1, keepdims=True)
        m_ref[h] = m_new

        pv = jnp.dot(p.astype(MATMUL_DTYPE), vh,
                     preferred_element_type=jnp.float32)   # (tq, d_k)
        acc_ref[:, lo:lo + d_k] = alpha * acc_ref[:, lo:lo + d_k] + pv

    @pl.when(kvi == pl.num_programs(2) - 1)
    def _():
        for h in range(num_heads):
            lo = h * d_k
            # Approximate EUP reciprocal: co-issues with the VPU/MXU work.
            acc_ref[:, lo:lo + d_k] = (
                acc_ref[:, lo:lo + d_k] * pl.reciprocal(l_ref[h], approx=True)
            )
        # Single lane-dense store of the whole (tq, D) output block.
        o_ref[0] = acc_ref[...].astype(o_ref.dtype)


# ----------------------------------------------------------------------------
# Wrappers
# ----------------------------------------------------------------------------
def pallas_stacked_linear(x2d, w_stack, b_stack, *, out_dtype):
    """y[p] = x2d @ w_stack[p] + b_stack[p] -> (P, M, N).

    w_stack: (P, K, N) pre-transposed bf16 weights; b_stack: (P, 1, N) f32.
    """
    m, k_dim = x2d.shape
    p, k_w, n = w_stack.shape
    assert k_w == k_dim and b_stack.shape == (p, 1, n)

    tm = _tile(m, TM_TARGET, 8)
    tn = _tile(n, TN_TARGET, 128)
    tk = _tile(k_dim, TK_TARGET, 128)
    grid = (p, m // tm, n // tn, k_dim // tk)

    return pl.pallas_call(
        linear_kernel,
        out_shape=jax.ShapeDtypeStruct((p, m, n), out_dtype),
        grid_spec=pltpu.PrefetchScalarGridSpec(
            num_scalar_prefetch=0,
            grid=grid,
            in_specs=[
                pl.BlockSpec((tm, tk), lambda pi, i, j, kk: (i, kk)),
                pl.BlockSpec((1, tk, tn), lambda pi, i, j, kk: (pi, kk, j)),
                pl.BlockSpec((1, 1, tn), lambda pi, i, j, kk: (pi, 0, j)),
            ],
            out_specs=pl.BlockSpec((1, tm, tn), lambda pi, i, j, kk: (pi, i, j)),
            scratch_shapes=[pltpu.VMEM((tm, tn), jnp.float32)],
        ),
        compiler_params=pltpu.CompilerParams(
            dimension_semantics=("parallel", "parallel", "parallel", "arbitrary")
        ),
    )(x2d, w_stack, b_stack)


def pallas_attention(q4, k4, v4, q_idx, k_idx, v_idx, *, num_heads):
    """Attention over (P, B, S, D) inputs; q/k/v selected by leading index.

    For self-attention, q4/k4/v4 are the SAME (3, B, S, D) fused-projection
    output with q_idx/k_idx/v_idx = 0/1/2 — the selection is a free BlockSpec
    offset, not an HBM slice copy.
    """
    _, b, s, d_model = q4.shape
    assert d_model % num_heads == 0
    d_k = d_model // num_heads

    tq = _tile(s, TQ_TARGET, 8)
    tkv = _tile(s, TKV_TARGET, 8)
    grid = (b, s // tq, s // tkv)

    kernel = functools.partial(attention_kernel, num_heads=num_heads, d_k=d_k)

    def in_spec(block_rows, p_sel, row_axis_is_q):
        if row_axis_is_q:
            idx_map = lambda bi, qi, ki, p=p_sel: (p, bi, qi, 0)
        else:
            idx_map = lambda bi, qi, ki, p=p_sel: (p, bi, ki, 0)
        return pl.BlockSpec((1, 1, block_rows, d_model), idx_map)

    return pl.pallas_call(
        kernel,
        out_shape=jax.ShapeDtypeStruct((b, s, d_model), ACT_DTYPE),
        grid_spec=pltpu.PrefetchScalarGridSpec(
            num_scalar_prefetch=0,
            grid=grid,
            in_specs=[
                in_spec(tq, q_idx, True),
                in_spec(tkv, k_idx, False),
                in_spec(tkv, v_idx, False),
            ],
            out_specs=pl.BlockSpec((1, tq, d_model),
                                   lambda bi, qi, ki: (bi, qi, 0)),
            scratch_shapes=[
                pltpu.VMEM((num_heads, tq, 1), jnp.float32),   # m (running max)
                pltpu.VMEM((num_heads, tq, 1), jnp.float32),   # l (running sum)
                pltpu.VMEM((tq, d_model), jnp.float32),        # acc
            ],
        ),
        compiler_params=pltpu.CompilerParams(
            dimension_semantics=("parallel", "parallel", "arbitrary")
        ),
    )(q4, k4, v4)


def prepare_params(params, num_heads):
    """One-time (init) preprocessing of PyTorch-layout parameters.

    - Transposes weights to (in, out) so the GEMM is a plain (tm,tk)x(tk,tn).
    - Stacks [W_q; W_k; W_v] / biases for the fused self-attention projection.
    - Folds the 1/sqrt(d_k) softmax scale into W_q and b_q.
    - Casts weights to bf16 (MXU operand dtype); biases stay f32 (added on the
      f32 accumulator).
    """
    d_model = params["w_q"].shape[0]
    assert d_model % num_heads == 0
    scale = 1.0 / math.sqrt(d_model // num_heads)

    def wt(w):
        return jnp.asarray(w).T.astype(MATMUL_DTYPE)        # (in, out)

    w_q, b_q = wt(params["w_q"] * scale), params["b_q"] * scale
    w_k, b_k = wt(params["w_k"]), params["b_k"]
    w_v, b_v = wt(params["w_v"]), params["b_v"]

    return {
        "w_qkv": jnp.stack([w_q, w_k, w_v], axis=0),                 # (3, D, D)
        "b_qkv": jnp.stack([b_q, b_k, b_v], axis=0)
                   .astype(jnp.float32).reshape(3, 1, d_model),      # (3, 1, D)
        "w_o": wt(params["w_o"])[None],                              # (1, D, D)
        "b_o": jnp.asarray(params["b_o"], jnp.float32).reshape(1, 1, d_model),
    }


def multi_head_attention(Q, K, V, prep, num_heads):
    """Forward pass identical to the PyTorch MultiHeadAttention (mask=None)."""
    b, s, d_model = Q.shape
    m = b * s

    if (Q is K) and (K is V):
        # Self-attention fast path: one fused stacked GEMM, output (3, M, D).
        # Attention reads q/k/v straight out of it via BlockSpec offsets.
        qkv = pallas_stacked_linear(Q.reshape(m, d_model),
                                    prep["w_qkv"], prep["b_qkv"],
                                    out_dtype=ACT_DTYPE)             # (3, m, D)
        qkv4 = qkv.reshape(3, b, s, d_model)                         # free reshape
        attn = pallas_attention(qkv4, qkv4, qkv4, 0, 1, 2, num_heads=num_heads)
    else:
        def proj(x, i):
            y = pallas_stacked_linear(x.reshape(m, d_model),
                                      prep["w_qkv"][i:i + 1],
                                      prep["b_qkv"][i:i + 1],
                                      out_dtype=ACT_DTYPE)           # (1, m, D)
            return y.reshape(1, b, s, d_model)

        q4, k4, v4 = proj(Q, 0), proj(K, 1), proj(V, 2)
        attn = pallas_attention(q4, k4, v4, 0, 0, 0, num_heads=num_heads)

    out = pallas_stacked_linear(attn.reshape(m, d_model),
                                prep["w_o"], prep["b_o"],
                                out_dtype=jnp.float32)               # (1, m, D)
    return out.reshape(b, s, d_model)


# ----------------------------------------------------------------------------
# Reference (pure JAX, f32) for sanity check
# ----------------------------------------------------------------------------
def reference_mha(Q, K, V, params, num_heads):
    b, s, d_model = Q.shape
    d_k = d_model // num_heads

    def lin(x, w, bias):
        return x @ w.T + bias

    def split(x):
        return x.reshape(b, s, num_heads, d_k).transpose(0, 2, 1, 3)

    q = split(lin(Q, params["w_q"], params["b_q"]))
    k = split(lin(K, params["w_k"], params["b_k"]))
    v = split(lin(V, params["w_v"], params["b_v"]))
    scores = jnp.einsum("bhqd,bhkd->bhqk", q, k) / math.sqrt(d_k)
    probs = jax.nn.softmax(scores, axis=-1)
    attn = jnp.einsum("bhqk,bhkd->bhqd", probs, v)
    attn = attn.transpose(0, 2, 1, 3).reshape(b, s, d_model)
    return lin(attn, params["w_o"], params["b_o"])


# ----------------------------------------------------------------------------
# Main
# ----------------------------------------------------------------------------
if __name__ == "__main__":
    batch, seq, d_model, num_heads = 2, 8, 32, 4

    key = jax.random.PRNGKey(0)
    keys = jax.random.split(key, 12)
    bound = 1.0 / math.sqrt(d_model)

    def u(k, shape):
        return jax.random.uniform(k, shape, jnp.float32, -bound, bound)

    params = {
        "w_q": u(keys[0], (d_model, d_model)), "b_q": u(keys[1], (d_model,)),
        "w_k": u(keys[2], (d_model, d_model)), "b_k": u(keys[3], (d_model,)),
        "w_v": u(keys[4], (d_model, d_model)), "b_v": u(keys[5], (d_model,)),
        "w_o": u(keys[6], (d_model, d_model)), "b_o": u(keys[7], (d_model,)),
    }
    prep = prepare_params(params, num_heads)   # init-time: transpose/stack/scale-fold

    Q = jax.random.normal(keys[8], (batch, seq, d_model), jnp.float32)
    K = jax.random.normal(keys[9], (batch, seq, d_model), jnp.float32)
    V = jax.random.normal(keys[10], (batch, seq, d_model), jnp.float32)

    # Tolerance covers bf16 MXU operands + approximate EUP reciprocal.
    TOL = dict(atol=5e-2, rtol=5e-2)

    # Cross-attention path (distinct Q/K/V -> three projection GEMMs).
    out = jax.block_until_ready(multi_head_attention(Q, K, V, prep, num_heads))
    ref = reference_mha(Q, K, V, params, num_heads)
    assert out.shape == (batch, seq, d_model)
    assert jnp.allclose(out, ref, **TOL), "cross-attn mismatch"

    # Self-attention path (Q is K is V -> one fused [W_q; W_k; W_v] GEMM).
    X = jax.random.normal(keys[11], (batch, seq, d_model), jnp.float32)
    out_self = jax.block_until_ready(
        multi_head_attention(X, X, X, prep, num_heads)
    )
    ref_self = reference_mha(X, X, X, params, num_heads)
    assert jnp.allclose(out_self, ref_self, **TOL), "self-attn mismatch"

    print("KERNEL_OK")
</pallas_src>

<mosaic_0001>
module attributes {stable_mosaic.version = 11 : i64} {
  func.func @linear_kernel(%arg0: i32, %arg1: i32, %arg2: i32, %arg3: i32, %arg4: memref<16x32xf32, #tpu.memory_space<vmem>>, %arg5: memref<1x32x32xbf16, #tpu.memory_space<vmem>>, %arg6: memref<1x1x32xf32, #tpu.memory_space<vmem>>, %arg7: memref<1x16x32xbf16, #tpu.memory_space<vmem>>, %arg8: memref<16x32xf32, #tpu.memory_space<vmem>>) attributes {dimension_semantics = [#tpu.dimension_semantics<parallel>, #tpu.dimension_semantics<parallel>, #tpu.dimension_semantics<parallel>, #tpu.dimension_semantics<arbitrary>], iteration_bounds = array<i64: 1, 1, 1, 1>, scalar_prefetch = 0 : i64, scratch_operands = 1 : i64, tpu.core_type = #tpu.core_type<tc>, window_params = [{transform_indices = @transform_0, window_bounds = array<i64: 16, 32>}, {transform_indices = @transform_1, window_bounds = array<i64: 1, 32, 32>}, {transform_indices = @transform_2, window_bounds = array<i64: 1, 1, 32>}, {transform_indices = @transform_3, window_bounds = array<i64: 1, 16, 32>}]} {
    %c0_i32 = arith.constant 0 : i32
    %0 = arith.cmpi eq, %arg3, %c0_i32 : i32
    %1 = arith.extui %0 : i1 to i32
    %c0_i32_0 = arith.constant 0 : i32
    %2 = arith.cmpi ne, %1, %c0_i32_0 : i32
    scf.if %2 {
      %cst_11 = arith.constant 0.000000e+00 : f32
      %14 = vector.broadcast %cst_11 : f32 to vector<16x32xf32>
      %c0_12 = arith.constant 0 : index
      %c0_13 = arith.constant 0 : index
      %15 = vector.load %arg8[%c0_12, %c0_13] : memref<16x32xf32, #tpu.memory_space<vmem>>, vector<16x32xf32>
      tpu.vector_store %arg8[%c0_12, %c0_13], %14 {strides = array<i32>} : memref<16x32xf32, #tpu.memory_space<vmem>>, vector<16x32xf32>,
    } else {
    }
    %c0 = arith.constant 0 : index
    %c0_1 = arith.constant 0 : index
    %3 = vector.load %arg8[%c0, %c0_1] : memref<16x32xf32, #tpu.memory_space<vmem>>, vector<16x32xf32>
    %c0_2 = arith.constant 0 : index
    %c0_3 = arith.constant 0 : index
    %4 = vector.load %arg4[%c0_2, %c0_3] : memref<16x32xf32, #tpu.memory_space<vmem>>, vector<16x32xf32>
    %5 = arith.truncf %4 : vector<16x32xf32> to vector<16x32xbf16>
    %c0_4 = arith.constant 0 : index
    %c0_5 = arith.constant 0 : index
    %c0_6 = arith.constant 0 : index
    %6 = vector.load %arg5[%c0_4, %c0_5, %c0_6] : memref<1x32x32xbf16, #tpu.memory_space<vmem>>, vector<1x32x32xbf16>
    %7 = vector.shape_cast %6 : vector<1x32x32xbf16> to vector<32x32xbf16>
    %cst = arith.constant dense<0.000000e+00> : vector<16x32xf32>
    %8 = tpu.matmul %5, %7, %cst {dimension_numbers = #tpu.dot_dimension_numbers<[1], [0], [0], [1], [0, 0, 1, 1], [], []>} : vector<16x32xbf16>, vector<32x32xbf16>, vector<16x32xf32> -> vector<16x32xf32>
    %9 = arith.addf %3, %8 : vector<16x32xf32>
    %c0_7 = arith.constant 0 : index
    %c0_8 = arith.constant 0 : index
    %10 = vector.load %arg8[%c0_7, %c0_8] : memref<16x32xf32, #tpu.memory_space<vmem>>, vector<16x32xf32>
    tpu.vector_store %arg8[%c0_7, %c0_8], %9 {strides = array<i32>} : memref<16x32xf32, #tpu.memory_space<vmem>>, vector<16x32xf32>,
    %c0_i32_9 = arith.constant 0 : i32
    %11 = arith.cmpi eq, %arg3, %c0_i32_9 : i32
    %12 = arith.extui %11 : i1 to i32
    %c0_i32_10 = arith.constant 0 : i32
    %13 = arith.cmpi ne, %12, %c0_i32_10 : i32
    scf.if %13 {
      %c0_11 = arith.constant 0 : index
      %c0_12 = arith.constant 0 : index
      %14 = vector.load %arg8[%c0_11, %c0_12] : memref<16x32xf32, #tpu.memory_space<vmem>>, vector<16x32xf32>
      %c0_13 = arith.constant 0 : index
      %c0_14 = arith.constant 0 : index
      %c0_15 = arith.constant 0 : index
      %15 = vector.load %arg6[%c0_13, %c0_14, %c0_15] : memref<1x1x32xf32, #tpu.memory_space<vmem>>, vector<1x1x32xf32>
      %16 = vector.shape_cast %15 : vector<1x1x32xf32> to vector<1x32xf32>
      %17 = vector.broadcast %16 : vector<1x32xf32> to vector<16x32xf32>
      %18 = arith.addf %14, %17 : vector<16x32xf32>
      %19 = arith.truncf %18 : vector<16x32xf32> to vector<16x32xbf16>
      %c0_16 = arith.constant 0 : index
      %c0_17 = arith.constant 0 : index
      %c0_18 = arith.constant 0 : index
      %20 = vector.load %arg7[%c0_16, %c0_17, %c0_18] : memref<1x16x32xbf16, #tpu.memory_space<vmem>>, vector<1x16x32xbf16>
      %21 = vector.shape_cast %20 : vector<1x16x32xbf16> to vector<16x32xbf16>
      %22 = vector.shape_cast %19 : vector<16x32xbf16> to vector<1x16x32xbf16>
      tpu.vector_store %arg7[%c0_16, %c0_17, %c0_18], %22 {strides = array<i32>} : memref<1x16x32xbf16, #tpu.memory_space<vmem>>, vector<1x16x32xbf16>,
    } else {
    }
    return
  }
  func.func @transform_0(%arg0: i32, %arg1: i32, %arg2: i32, %arg3: i32) -> (i32, i32) {
    %c0_i32 = arith.constant 0 : i32
    return %arg1, %arg3 : i32, i32
  }
  func.func @transform_1(%arg0: i32, %arg1: i32, %arg2: i32, %arg3: i32) -> (i32, i32, i32) {
    %c0_i32 = arith.constant 0 : i32
    return %arg0, %arg3, %arg2 : i32, i32, i32
  }
  func.func @transform_2(%arg0: i32, %arg1: i32, %arg2: i32, %arg3: i32) -> (i32, i32, i32) {
    %c0_i32 = arith.constant 0 : i32
    %c0_i32_0 = arith.constant 0 : i32
    return %arg0, %c0_i32, %arg2 : i32, i32, i32
  }
  func.func @transform_3(%arg0: i32, %arg1: i32, %arg2: i32, %arg3: i32) -> (i32, i32, i32) {
    %c0_i32 = arith.constant 0 : i32
    return %arg0, %arg1, %arg2 : i32, i32, i32
  }
}

</mosaic_0001>

<llo_original>
// kernel: tpu_custom_call.1
$region0: #{tpu_custom_call.1}
  #allocation0 [shape = 'u32[]', space=smem, size = 0x4, offset = 0x4, fixed_abs, tag = 'smem constant byte address 0x4 - core index']
  #allocation1 [shape = 'u32[72,128]{1,0:T(1,128)}', space=vmem, size = 0x9000, scoped, tag = 'internal scratch']
  #allocation2 [shape = 'f32[16,32]{1,0:T(8,128)}', space=vmem, size = 0x2000, scoped, tag = 'scratch operand']
  %s0 = inlined_call_operand.hbm [shape: f32[16,32], index: 0, kind: input, shape index: {}]
  %s1 = inlined_call_operand.hbm [shape: bf16[1,32,32], index: 1, kind: input, shape index: {}]
  %s2 = inlined_call_operand.vmem [shape: f32[1,1,32], index: 2, kind: input, shape index: {}]
  %s3 = inlined_call_operand.hbm [shape: bf16[1,16,32], index: 3, kind: output, shape index: {}]
  %s4 = sld [smem:[#allocation0]]
  $region38: #{tpu_custom_call.1} parent=0
    _
  %s6 = ssub.s32 1, %s4
  %s7 = scalar_select 0, %s6, %s4
  $region1: #{tpu_custom_call.1} parent=0
    #allocation3 [shape = 'u8[8192]{0}', space=vmem, size = 0x2000, scoped, tag = 'input window, operand 0, single buffered']
    #allocation4 [shape = 's32[1]{0}', space=sflag, size = 0x4, scoped, tag = 'scoped memory for tpu_custom_call.1']
    #allocation5 [shape = 's32[1]{0}', space=sflag, size = 0x4, scoped, tag = 'scoped memory for tpu_custom_call.1']
    #allocation6 [shape = 'u8[8192]{0}', space=vmem, size = 0x2000, scoped, tag = 'input window, operand 1, single buffered']
    #allocation7 [shape = 's32[1]{0}', space=sflag, size = 0x4, scoped, tag = 'scoped memory for tpu_custom_call.1']
    #allocation8 [shape = 'u8[4096]{0}', space=vmem, size = 0x1000, scoped, tag = 'output window, operand 0, single buffered']
    %8 = vsyncpa [#allocation4], 0
    %9 = vsyncpa [#allocation7], 0
    %10 = vsyncpa [#allocation5], 0
    // Predicated region
    $region2: #{tpu_custom_call.1} parent=1 // pred_check
      _
    $region3: #{tpu_custom_call.1} parent=1 // pred_check_branch
      %12 = sbr.rel (0) target = $region5
    $region4: #{tpu_custom_call.1} parent=1 // pred_region
      %14 = vsyncadd [#allocation4], 0
      %s15 = sshll.u32 %s0, 4
      %s16 = int_to_ptr.hbm [resolvable:$true] %s15
      %s17 = sshll.u32 [#allocation3], 4
      %s18 = int_to_ptr.vmem [resolvable:$true] %s17
      %23 = dma.hbm_to_vmem [thread:$0]  %s16, 256, %s18, [#allocation4], 128, 128, 8
    $region5: #{tpu_custom_call.1} parent=1 // pred_fallthru
      _
    // Predicated region
    $region6: #{tpu_custom_call.1} parent=1 // pred_check
      _
    $region7: #{tpu_custom_call.1} parent=1 // pred_check_branch
      %25 = sbr.rel (0) target = $region9
    $region8: #{tpu_custom_call.1} parent=1 // pred_region
      %27 = vsyncadd [#allocation7], 0
      %s28 = sshll.u32 %s1, 4
      %s29 = int_to_ptr.hbm [resolvable:$true] %s28
      %s30 = sshll.u32 [#allocation6], 4
      %s31 = int_to_ptr.vmem [resolvable:$true] %s30
      %36 = dma.hbm_to_vmem [thread:$0]  %s29, 256, %s31, [#allocation7], 64, 64, 4
    $region9: #{tpu_custom_call.1} parent=1 // pred_fallthru
      _
    // Predicated region
    $region10: #{tpu_custom_call.1} parent=1 // pred_check
      _
    $region11: #{tpu_custom_call.1} parent=1 // pred_check_branch
      %38 = sbr.rel (0) target = $region13
    $region12: #{tpu_custom_call.1} parent=1 // pred_region
      _
    $region13: #{tpu_custom_call.1} parent=1 // pred_fallthru
      _
    // Predicated region
    $region14: #{tpu_custom_call.1} parent=1 // pred_check
      _
    $region15: #{tpu_custom_call.1} parent=1 // pred_check_branch
      %40 = sbr.rel (0) target = $region17
    $region16: #{tpu_custom_call.1} parent=1 // pred_region
      %42 = dma.done [#allocation4], 256
    $region17: #{tpu_custom_call.1} parent=1 // pred_fallthru
      _
    // Predicated region
    $region18: #{tpu_custom_call.1} parent=1 // pred_check
      _
    $region19: #{tpu_custom_call.1} parent=1 // pred_check_branch
      %44 = sbr.rel (0) target = $region21
    $region20: #{tpu_custom_call.1} parent=1 // pred_region
      %46 = dma.done [#allocation7], 256
    $region21: #{tpu_custom_call.1} parent=1 // pred_fallthru
      _
    %p48 = scmp.eq.s32.totalorder 0, 0
    // Predicated region
    $region22: #{tpu_custom_call.1} parent=1 // pred_check
      %p49 = pneg %p48
    $region23: #{tpu_custom_call.1} parent=1 // pred_check_branch
      %51 = sbr.rel (%p49) target = $region25
    $region24: #{tpu_custom_call.1} parent=1 // pred_region
      %vm52 = vcmask 261120
      %53 = vst.msk [vmem:[#allocation2] sm:$0xff] %vm52, 0.0
      %54 = vst.msk [vmem:[#allocation2 + $0x8] sm:$0xff] %vm52, 0.0
    $region25: #{tpu_custom_call.1} parent=1 // pred_fallthru
      _
    %v55 = vld [vmem:[#allocation2] sm:$0xff]
    %v56 = vld [vmem:[#allocation2 + $0x8] sm:$0xff]
    %v57 = vld [vmem:[#allocation3] sm:$0xff]
    %v58 = vld [vmem:[#allocation3 + $0x8] sm:$0xff]
    %v59 = vpack.c.bf16 %v58, %v57
    %v60 = vld [vmem:[#allocation6] sm:$0xf]
    %v61 = vld [vmem:[#allocation6 + $0x4] sm:$0xf]
    %v62 = vld [vmem:[#allocation6 + $0x8] sm:$0xf]
    %v63 = vld [vmem:[#allocation6 + $0xc] sm:$0xf]
    %v68 = vunpack.c.l.b16 %v60
    %v69 = vunpack.c.l.b16 %v61
    %v70 = vunpack.c.l.b16 %v62
    %v71 = vunpack.c.l.b16 %v63
    %v72 = vpack.c.b16 %v69, %v68
    %v73 = vpack.c.b16 %v71, %v70
    %vm76 = vcmask 261120
    %v78 = vsel %vm76, %v59, 0
    %80 = vmatpush.bf16.msra.mxu0 0
    %81 = vmatpush.bf16.msra.mxu0 0
    %82 = vmatpush.bf16.msra.mxu0 0
    %83 = vmatpush.bf16.msra.mxu0 0
    %84 = vmatpush.bf16.msra.mxu0 0
    %85 = vmatpush.bf16.msra.mxu0 0
    %86 = vmatpush.bf16.msra.mxu0 %v73
    %87 = vmatpush.bf16.msra.mxu0 %v72
    %88 = vmatmul.bf16.gmra.mxu0 %v78
    %v89 = vpop.f32.mrf.mxu0
    %v90 = vadd.f32 0.0, %v89
    %v91 = vpop.f32.mrf.mxu0
    %v92 = vadd.f32 0.0, %v91
    %93 = vdwg.mxu0
    %v94 = vadd.f32 %v55, %v90
    %v95 = vadd.f32 %v56, %v92
    %96 = vst.msk [vmem:[#allocation2] sm:$0xff] %vm76, %v94
    %97 = vst.msk [vmem:[#allocation2 + $0x8] sm:$0xff] %vm76, %v95
    // Predicated region
    $region26: #{tpu_custom_call.1} parent=1 // pred_check
      %p98 = pneg %p48
    $region27: #{tpu_custom_call.1} parent=1 // pred_check_branch
      %100 = sbr.rel (%p98) target = $region29
    $region28: #{tpu_custom_call.1} parent=1 // pred_region
      %v101 = vld [vmem:[#allocation2] sm:$0xff]
      %v102 = vld [vmem:[#allocation2 + $0x8] sm:$0xff]
      %v103 = vld [vmem:[%s2] sm:$0x1]
      %v105 = vperm.slane %v103, 0
      %v107 = vadd.f32 %v101, %v105
      %v108 = vadd.f32 %v102, %v105
      %v109 = vpack.c.bf16 %v107, %v107
      %v110 = vpack.c.bf16 %v108, %v108
      %vm111 = vcmask 257024
      %112 = vst.msk [vmem:[#allocation8] sm:$0xf] %vm111, %v109
      %113 = vst.msk [vmem:[#allocation8 + $0x4] sm:$0xf] %vm111, %v110
    $region29: #{tpu_custom_call.1} parent=1 // pred_fallthru
      _
    // Predicated region
    $region30: #{tpu_custom_call.1} parent=1 // pred_check
      _
    $region31: #{tpu_custom_call.1} parent=1 // pred_check_branch
      %115 = sbr.rel (0) target = $region33
    $region32: #{tpu_custom_call.1} parent=1 // pred_region
      %117 = vsyncadd [#allocation5], 0
      %s118 = sshll.u32 [#allocation8], 4
      %s119 = int_to_ptr.vmem [resolvable:$true] %s118
      %s120 = sshll.u32 %s3, 4
      %s121 = int_to_ptr.hbm [resolvable:$true] %s120
      %126 = dma.vmem_to_hbm [thread:$0]  %s119, 128, %s121, [#allocation5], 64, 64, 4
    $region33: #{tpu_custom_call.1} parent=1 // pred_fallthru
      _
    // Predicated region
    $region34: #{tpu_custom_call.1} parent=1 // pred_check
      _
    $region35: #{tpu_custom_call.1} parent=1 // pred_check_branch
      %128 = sbr.rel (0) target = $region37
    $region36: #{tpu_custom_call.1} parent=1 // pred_region
      %130 = dma.done [#allocation5], 128
    $region37: #{tpu_custom_call.1} parent=1 // pred_fallthru
      _
    %131 = vsyncpa [#allocation4], 1
    %132 = vsyncpa [#allocation7], 1
    %133 = vsyncpa [#allocation5], 1

</llo_original>
